<compile_context>
chip_gen: v7x
topology: tpu7x:2x2x1
jax: 0.10.0
libtpu: 0.0.40
codegen_flags: <defaults>
</compile_context>

<pallas_src>
import functools

import jax
import jax.numpy as jnp
from jax.experimental import pallas as pl
from jax.experimental.pallas import tpu as pltpu


# ---------------------------------------------------------------------------
# Pallas kernel: fused per-group contrastive loss
# ---------------------------------------------------------------------------
def _contrastive_kernel(feat_ref, dist_ref, loss_ref, *, inv_temp, loss_scale):
    # feat_ref: (GB, T, D) bf16   features for GB groups
    # dist_ref: (GB, T, T) f32    acf-valued distance map
    # loss_ref: (GB, T)    f32    per-anchor loss
    f = feat_ref[...]                                  # stays bf16 for the MXU
    d = dist_ref[...]
    t = d.shape[1]

    # S = F F^T / temperature  (bf16 operands, f32 accumulation on the MXU)
    s = jnp.einsum("gtd,gsd->gts", f, f,
                   preferred_element_type=jnp.float32) * inv_temp
    # torch.max(..., dim=1, keepdim=True): per-column max over the anchor axis
    logits = s - jnp.max(s, axis=1, keepdims=True)

    row_id = jax.lax.broadcasted_iota(jnp.int32, (t, t), 0)
    col_id = jax.lax.broadcasted_iota(jnp.int32, (t, t), 1)
    diag = (row_id == col_id)[None, :, :]                              # (1,T,T)

    # positive mask: off-self entries attaining the per-row acf max, plus
    # off-diagonal entries whose acf value is exactly 1.0 (float add keeps the
    # degenerate all-ones row at weight 2, matching the torch reference).
    self_mask = d == 1.0
    d_wo_self = jnp.where(self_mask, -jnp.inf, d)
    acf_row_max = jnp.max(d_wo_self, axis=2, keepdims=True)
    pos = ((d_wo_self == acf_row_max).astype(jnp.float32)
           + jnp.where(self_mask & ~diag, 1.0, 0.0))

    # masked log-softmax over the contrast dim (torch dim=2); the extra per-row
    # max subtraction cancels exactly and keeps exp() bounded.
    row_max = jnp.max(jnp.where(diag, -jnp.inf, logits), axis=2, keepdims=True)
    exp_logits = jnp.where(diag, 0.0, jnp.exp(logits - row_max))
    log_prob = logits - (jnp.log(jnp.sum(exp_logits, axis=2, keepdims=True))
                         + row_max)

    numer = jnp.sum(d * pos * log_prob, axis=2)                        # (GB,T)
    count = jnp.sum(pos, axis=2)                                       # (GB,T)
    # divide -> EUP slot (co-issues for free); fold -loss_scale into the mul.
    loss_ref[...] = (numer * pl.reciprocal(count, approx=True)
                     * (-loss_scale)).astype(loss_ref.dtype)


# ---------------------------------------------------------------------------
# Block sizing / VMEM accounting
# ---------------------------------------------------------------------------
def _round_up(x, m):
    return ((x + m - 1) // m) * m


def _tpu_vmem_bytes():
    try:
        cap = int(pltpu.get_tpu_info().vmem_capacity_bytes)
        if cap > 0:
            return cap
    except Exception:
        pass
    return 64 * 1024 * 1024        # conservative (v7x-sized) fallback


def _pick_group_block(g, t, d, *, vmem_budget):
    """Largest per-block group count whose padded footprint fits the budget."""
    t_s = _round_up(t, 8)          # sublane-padded T
    d_l = _round_up(d, 128)        # lane-padded D
    t_l = _round_up(t, 128)        # lane-padded T (lane position)
    per_group = (
        2 * (t_s * d_l * 2)        # double-buffered bf16 feature block
        + 2 * (t_s * t_l * 4)      # double-buffered f32 distmap block
        + 2 * (t_l * 4)            # double-buffered f32 loss row
        + 8 * (t_s * t_l * 4)      # ~8 live f32 (T,T) temporaries in the body
    )
    gb = max(1, vmem_budget // per_group)
    # prefer >= 4 grid steps (amortize ~0.35us/step; v7x megacore needs >= 2)
    target_steps = 4 if g >= 4 else (2 if g >= 2 else 1)
    gb = min(gb, max(1, -(-g // target_steps)), g)
    if g > 8:
        # sublane-aligned output block.  TODO(synk): for T so large that even 8
        # groups exceed the budget, fall back to a (gb, 1, t) output layout.
        gb = max(8, (gb // 8) * 8)
    else:
        gb = g                     # tiny G: single block == full array dims
    return gb


def _pad_groups(x, g_pad):
    g = x.shape[0]
    if g_pad == g:
        return x
    return jnp.pad(x, [(0, g_pad - g)] + [(0, 0)] * (x.ndim - 1))


def _contrastive_loss(features, distmap, *, temperature, base_temperature):
    """features: (G, T, D), distmap: (G, T, T)  ->  per-anchor loss (G, T)."""
    g, t, d = features.shape

    vmem_cap = _tpu_vmem_bytes()
    vmem_limit = min((vmem_cap * 3) // 4, 100 * 1024 * 1024)  # 48MiB on v7x
    gb = _pick_group_block(g, t, d, vmem_budget=vmem_limit // 2)
    g_pad = _round_up(g, gb)

    feat = _pad_groups(features.astype(jnp.bfloat16), g_pad)   # halve HBM read
    dist = _pad_groups(distmap.astype(jnp.float32), g_pad)
    # TODO(synk): the (G,T,T) f32 distmap remains the dominant HBM stream; it
    # could be built in-kernel from scalar-prefetched (G,T) indices + a VMEM
    # acf row, but the exact-equality mask tests (d==1.0, d==rowmax) make a
    # down-cast/gather rework risky, so it stays f32 here.

    kernel = functools.partial(
        _contrastive_kernel,
        inv_temp=1.0 / float(temperature),
        loss_scale=float(temperature) / float(base_temperature))

    flops = g_pad * (2 * t * t * d + 10 * t * t)
    transcendentals = g_pad * (t * t + 2 * t)
    bytes_accessed = g_pad * (t * d * 2 + t * t * 4 + t * 4)

    loss = pl.pallas_call(
        kernel,
        out_shape=jax.ShapeDtypeStruct((g_pad, t), jnp.float32),
        grid=(g_pad // gb,),
        in_specs=[
            pl.BlockSpec((gb, t, d), lambda i: (i, 0, 0)),
            pl.BlockSpec((gb, t, t), lambda i: (i, 0, 0)),
        ],
        out_specs=pl.BlockSpec((gb, t), lambda i: (i, 0)),
        compiler_params=pltpu.CompilerParams(
            dimension_semantics=("parallel",),
            vmem_limit_bytes=int(vmem_limit)),
        cost_estimate=pl.CostEstimate(
            flops=int(flops),
            transcendentals=int(transcendentals),
            bytes_accessed=int(bytes_accessed)),
    )(feat, dist)
    return loss[:g]


# ---------------------------------------------------------------------------
# Module wrapper (JAX port of the PyTorch AutoConCI forward pass)
# ---------------------------------------------------------------------------
class AutoConCI:
    def __init__(self, batch_size, seq_len, acf_values,
                 temperature=0.07, contrast_mode="all", base_temperature=0.07):
        self.batch_size = batch_size
        self.seq_len = seq_len
        self.acf_values = jnp.asarray(acf_values, dtype=jnp.float32)   # (C, L)
        self.temperature = float(temperature)
        self.contrast_mode = contrast_mode
        self.base_temperature = float(base_temperature)

    def _select_indices(self, key, bc):
        t = self.seq_len // 3
        rand = jax.random.uniform(key, (bc, self.seq_len))
        # TODO(synk): random top-T selection (torch.rand().argsort()) stays in XLA.
        return jnp.argsort(rand, axis=-1)[:, :t]

    def __call__(self, features, labels, *, key):
        bc, _, d = features.shape
        c = bc // self.batch_size
        t = self.seq_len // 3

        feature_idxs = self._select_indices(key, bc)                   # (BC, T)
        idx_full = jnp.broadcast_to(feature_idxs[:, :, None], (bc, t, d))
        selected = jnp.take_along_axis(features, idx_full, axis=1)     # (BC, T, D)

        # local distmap: acf[channel, |idx_i - idx_j|]
        # TODO(synk): irregular ACF-table gather kept as XLA glue (data-dependent).
        lag = jnp.abs(feature_idxs[:, :, None] - feature_idxs[:, None, :])
        chan = jnp.arange(bc, dtype=jnp.int32) % c                     # bc = b*C + c
        local_distmap = self.acf_values[chan[:, None, None], lag]      # (BC, T, T)
        local_loss = _contrastive_loss(
            selected, local_distmap,
            temperature=self.temperature, base_temperature=self.base_temperature)

        # global: max-pool over time -> (C, B, D), acf-valued label distances
        pooled = jnp.max(features, axis=1)                             # (BC, D)
        global_features = pooled.reshape(self.batch_size, c, d).transpose(1, 0, 2)
        glag = jnp.abs(labels[:, None] - labels[None, :])              # (B, B)
        global_distmap = self.acf_values[:, glag]                      # (C, B, B)
        global_loss = _contrastive_loss(
            global_features, global_distmap,
            temperature=self.temperature, base_temperature=self.base_temperature)

        return local_loss, global_loss


# ---------------------------------------------------------------------------
# Pure-JAX reference (mirrors the PyTorch module; matmul operands cast to bf16
# to match the kernel's deliberate MXU precision choice).
# ---------------------------------------------------------------------------
def _reference_forward(features, labels, feature_idxs, acf_values, batch_size,
                       temperature, base_temperature):
    bc, _, d = features.shape
    c = bc // batch_size
    t = feature_idxs.shape[1]

    def contrastive(feat, dist):
        fb = feat.astype(jnp.bfloat16)
        adc = jnp.einsum("gtd,gsd->gts", fb, fb,
                         preferred_element_type=jnp.float32) / temperature
        logits = adc - jnp.max(adc, axis=1, keepdims=True)
        n = feat.shape[1]
        neg_mask = (1.0 - jnp.eye(n, dtype=jnp.float32))[None]
        self_mask = dist == 1.0
        d_wo = jnp.where(self_mask, -jnp.inf, dist)
        pos = ((d_wo == jnp.max(d_wo, axis=2, keepdims=True)).astype(jnp.float32)
               + neg_mask * self_mask.astype(jnp.float32))
        exp_logits = jnp.exp(logits) * neg_mask
        log_prob = logits - jnp.log(exp_logits.sum(2, keepdims=True))
        mean_pos = (dist * pos * log_prob).sum(2) / pos.sum(2)
        return -(temperature / base_temperature) * mean_pos

    idx_full = jnp.broadcast_to(feature_idxs[:, :, None], (bc, t, d))
    selected = jnp.take_along_axis(features, idx_full, axis=1)
    lag = jnp.abs(feature_idxs[:, :, None] - feature_idxs[:, None, :])
    chan = jnp.arange(bc) % c
    local_dist = acf_values[chan[:, None, None], lag]
    local_loss = contrastive(selected, local_dist)

    pooled = jnp.max(features, axis=1)
    gf = pooled.reshape(batch_size, c, d).transpose(1, 0, 2)
    glag = jnp.abs(labels[:, None] - labels[None, :])
    gdist = acf_values[:, glag]
    global_loss = contrastive(gf, gdist)
    return local_loss, global_loss


if __name__ == "__main__":
    key = jax.random.PRNGKey(0)
    k_feat, k_acf, k_idx = jax.random.split(key, 3)

    batch_size, channels, seq_len, dim = 4, 4, 12, 16
    bc = batch_size * channels
    t = seq_len // 3

    # unit-norm features (typical contrastive-learning input): (B*C, seq_len, D)
    features = jax.random.normal(k_feat, (bc, seq_len, dim), dtype=jnp.float32)
    features = features / jnp.linalg.norm(features, axis=-1, keepdims=True)

    # per-channel autocorrelation table: acf[c, 0] = 1.0, |acf[c, lag>0]| < 1
    acf_tail = 0.9 * jax.random.uniform(k_acf, (channels, seq_len - 1),
                                        minval=-1.0, maxval=1.0)
    acf_values = jnp.concatenate(
        [jnp.ones((channels, 1), jnp.float32), acf_tail.astype(jnp.float32)],
        axis=1)

    labels = jnp.arange(batch_size, dtype=jnp.int32)   # window start offsets

    model = AutoConCI(batch_size, seq_len, acf_values,
                      temperature=0.2, base_temperature=0.07)
    local_loss, global_loss = model(features, labels, key=k_idx)
    local_loss, global_loss = jax.block_until_ready((local_loss, global_loss))

    # reference using the identical sampled indices
    feature_idxs = model._select_indices(k_idx, bc)
    ref_local, ref_global = _reference_forward(
        features, labels, feature_idxs, acf_values, batch_size,
        model.temperature, model.base_temperature)

    assert local_loss.shape == (bc, t)
    assert global_loss.shape == (channels, batch_size)
    assert bool(jnp.isfinite(local_loss).all()) and bool(jnp.isfinite(global_loss).all())
    assert jnp.allclose(local_loss, ref_local, atol=1e-2, rtol=1e-2)
    assert jnp.allclose(global_loss, ref_global, atol=1e-2, rtol=1e-2)

    print("KERNEL_OK")
</pallas_src>

<mosaic_0001>
module attributes {stable_mosaic.version = 11 : i64} {
  func.func @_contrastive_kernel(%arg0: i32, %arg1: memref<8x4x16xbf16, #tpu.memory_space<vmem>>, %arg2: memref<8x4x4xf32, #tpu.memory_space<vmem>>, %arg3: memref<8x4xf32, #tpu.memory_space<vmem>>) attributes {dimension_semantics = [#tpu.dimension_semantics<parallel>], iteration_bounds = array<i64: 2>, scalar_prefetch = 0 : i64, scratch_operands = 0 : i64, tpu.core_type = #tpu.core_type<tc>, window_params = [{transform_indices = @transform_0, window_bounds = array<i64: 8, 4, 16>}, {transform_indices = @transform_1, window_bounds = array<i64: 8, 4, 4>}, {transform_indices = @transform_2, window_bounds = array<i64: 8, 4>}]} {
    %c0 = arith.constant 0 : index
    %c0_0 = arith.constant 0 : index
    %c0_1 = arith.constant 0 : index
    %0 = vector.load %arg1[%c0, %c0_0, %c0_1] : memref<8x4x16xbf16, #tpu.memory_space<vmem>>, vector<8x4x16xbf16>
    %c0_2 = arith.constant 0 : index
    %c0_3 = arith.constant 0 : index
    %c0_4 = arith.constant 0 : index
    %1 = vector.load %arg2[%c0_2, %c0_3, %c0_4] : memref<8x4x4xf32, #tpu.memory_space<vmem>>, vector<8x4x4xf32>
    "tpu.trace_start"() <{level = 10 : i32, message = "gtd,gsd->gts"}> : () -> ()
    %cst = arith.constant dense<0.000000e+00> : vector<8x4x4xf32>
    %2 = tpu.matmul %0, %0, %cst {dimension_numbers = #tpu.dot_dimension_numbers<[2], [2], [1], [1], [0, 0, 0, 1, 1, 1], [0], [0]>} : vector<8x4x16xbf16>, vector<8x4x16xbf16>, vector<8x4x4xf32> -> vector<8x4x4xf32>
    "tpu.trace_stop"() : () -> ()
    %cst_5 = arith.constant 5.000000e+00 : f32
    %3 = vector.broadcast %cst_5 : f32 to vector<8x4x4xf32>
    %4 = arith.mulf %2, %3 : vector<8x4x4xf32>
    %cst_6 = arith.constant dense<0xFF800000> : vector<8x4xf32>
    %5 = vector.multi_reduction <maximumf>, %4, %cst_6 [1] : vector<8x4x4xf32> to vector<8x4xf32>
    %6 = vector.shape_cast %5 : vector<8x4xf32> to vector<8x1x4xf32>
    %7 = vector.broadcast %6 : vector<8x1x4xf32> to vector<8x4x4xf32>
    %8 = arith.subf %4, %7 : vector<8x4x4xf32>
    %9 = tpu.iota {dimensions = array<i32: 0>} : vector<4x4xi32>
    %10 = tpu.iota {dimensions = array<i32: 1>} : vector<4x4xi32>
    %11 = arith.cmpi eq, %9, %10 : vector<4x4xi32>
    %12 = vector.shape_cast %11 : vector<4x4xi1> to vector<1x4x4xi1>
    %cst_7 = arith.constant 1.000000e+00 : f32
    %13 = vector.broadcast %cst_7 : f32 to vector<8x4x4xf32>
    %14 = arith.cmpf oeq, %1, %13 : vector<8x4x4xf32>
    %cst_8 = arith.constant 0xFF800000 : f32
    %15 = vector.broadcast %cst_8 : f32 to vector<8x4x4xf32>
    %16 = arith.select %14, %15, %1 : vector<8x4x4xi1>, vector<8x4x4xf32>
    %cst_9 = arith.constant dense<0xFF800000> : vector<8x4xf32>
    %17 = vector.multi_reduction <maximumf>, %16, %cst_9 [2] : vector<8x4x4xf32> to vector<8x4xf32>
    %18 = vector.shape_cast %17 : vector<8x4xf32> to vector<8x4x1xf32>
    %19 = vector.broadcast %18 : vector<8x4x1xf32> to vector<8x4x4xf32>
    %20 = arith.cmpf oeq, %16, %19 : vector<8x4x4xf32>
    %21 = arith.extui %20 : vector<8x4x4xi1> to vector<8x4x4xi32>
    %22 = arith.sitofp %21 : vector<8x4x4xi32> to vector<8x4x4xf32>
    %cst_10 = arith.constant dense<true> : vector<1x4x4xi1>
    %23 = arith.xori %12, %cst_10 : vector<1x4x4xi1>
    %24 = vector.broadcast %23 : vector<1x4x4xi1> to vector<8x4x4xi1>
    %25 = arith.andi %14, %24 : vector<8x4x4xi1>
    %cst_11 = arith.constant 1.000000e+00 : f32
    %cst_12 = arith.constant 0.000000e+00 : f32
    %26 = vector.broadcast %cst_11 : f32 to vector<8x4x4xf32>
    %27 = vector.broadcast %cst_12 : f32 to vector<8x4x4xf32>
    %28 = arith.select %25, %26, %27 : vector<8x4x4xi1>, vector<8x4x4xf32>
    %29 = arith.addf %22, %28 : vector<8x4x4xf32>
    %cst_13 = arith.constant 0xFF800000 : f32
    %30 = vector.shape_cast %12 : vector<1x4x4xi1> to vector<1x4x4xi1>
    %31 = vector.broadcast %30 : vector<1x4x4xi1> to vector<8x4x4xi1>
    %32 = vector.broadcast %cst_13 : f32 to vector<8x4x4xf32>
    %33 = arith.select %31, %32, %8 : vector<8x4x4xi1>, vector<8x4x4xf32>
    %cst_14 = arith.constant dense<0xFF800000> : vector<8x4xf32>
    %34 = vector.multi_reduction <maximumf>, %33, %cst_14 [2] : vector<8x4x4xf32> to vector<8x4xf32>
    %35 = vector.shape_cast %34 : vector<8x4xf32> to vector<8x4x1xf32>
    %36 = vector.broadcast %35 : vector<8x4x1xf32> to vector<8x4x4xf32>
    %37 = arith.subf %8, %36 : vector<8x4x4xf32>
    %38 = math.exp %37 : vector<8x4x4xf32>
    %cst_15 = arith.constant 0.000000e+00 : f32
    %39 = vector.shape_cast %12 : vector<1x4x4xi1> to vector<1x4x4xi1>
    %40 = vector.broadcast %39 : vector<1x4x4xi1> to vector<8x4x4xi1>
    %41 = vector.broadcast %cst_15 : f32 to vector<8x4x4xf32>
    %42 = arith.select %40, %41, %38 : vector<8x4x4xi1>, vector<8x4x4xf32>
    %cst_16 = arith.constant dense<0.000000e+00> : vector<8x4xf32>
    %43 = vector.multi_reduction <add>, %42, %cst_16 [2] : vector<8x4x4xf32> to vector<8x4xf32>
    %44 = vector.shape_cast %43 : vector<8x4xf32> to vector<8x4x1xf32>
    %45 = math.log %44 : vector<8x4x1xf32>
    %46 = arith.addf %45, %35 : vector<8x4x1xf32>
    %47 = vector.broadcast %46 : vector<8x4x1xf32> to vector<8x4x4xf32>
    %48 = arith.subf %8, %47 : vector<8x4x4xf32>
    %49 = arith.mulf %1, %29 : vector<8x4x4xf32>
    %50 = arith.mulf %49, %48 : vector<8x4x4xf32>
    %cst_17 = arith.constant dense<0.000000e+00> : vector<8x4xf32>
    %51 = vector.multi_reduction <add>, %50, %cst_17 [2] : vector<8x4x4xf32> to vector<8x4xf32>
    %cst_18 = arith.constant dense<0.000000e+00> : vector<8x4xf32>
    %52 = vector.multi_reduction <add>, %29, %cst_18 [2] : vector<8x4x4xf32> to vector<8x4xf32>
    %53 = tpu.reciprocal %52 {approx = true} : vector<8x4xf32> -> vector<8x4xf32>
    %54 = arith.mulf %51, %53 : vector<8x4xf32>
    %cst_19 = arith.constant -2.85714293 : f32
    %55 = vector.broadcast %cst_19 : f32 to vector<8x4xf32>
    %56 = arith.mulf %54, %55 : vector<8x4xf32>
    %c0_20 = arith.constant 0 : index
    %c0_21 = arith.constant 0 : index
    %57 = vector.load %arg3[%c0_20, %c0_21] : memref<8x4xf32, #tpu.memory_space<vmem>>, vector<8x4xf32>
    tpu.vector_store %arg3[%c0_20, %c0_21], %56 {strides = array<i32>} : memref<8x4xf32, #tpu.memory_space<vmem>>, vector<8x4xf32>,
    return
  }
  func.func @transform_0(%arg0: i32) -> (i32, i32, i32) {
    %c0_i32 = arith.constant 0 : i32
    %c0_i32_0 = arith.constant 0 : i32
    %c0_i32_1 = arith.constant 0 : i32
    return %arg0, %c0_i32, %c0_i32_0 : i32, i32, i32
  }
  func.func @transform_1(%arg0: i32) -> (i32, i32, i32) {
    %c0_i32 = arith.constant 0 : i32
    %c0_i32_0 = arith.constant 0 : i32
    %c0_i32_1 = arith.constant 0 : i32
    return %arg0, %c0_i32, %c0_i32_0 : i32, i32, i32
  }
  func.func @transform_2(%arg0: i32) -> (i32, i32) {
    %c0_i32 = arith.constant 0 : i32
    %c0_i32_0 = arith.constant 0 : i32
    return %arg0, %c0_i32 : i32, i32
  }
}

</mosaic_0001>

<llo_original>
// kernel: tpu_custom_call.1
$region0: #{tpu_custom_call.1}
  #allocation0 [shape = 'u32[]', space=smem, size = 0x4, offset = 0x4, fixed_abs, tag = 'smem constant byte address 0x4 - core index']
  #allocation1 [shape = 'u32[144,128]{1,0:T(1,128)}', space=vmem, size = 0x12000, scoped, tag = 'internal scratch']
  %s0 = inlined_call_operand.vmem [shape: bf16[16,4,16], index: 0, kind: input, shape index: {}]
  %s1 = inlined_call_operand.vmem [shape: f32[16,4,4], index: 1, kind: input, shape index: {}]
  %s2 = inlined_call_operand.vmem [shape: f32[16,4], index: 2, kind: output, shape index: {}]
  %s3 = sld [smem:[#allocation0]]
  $region41: #{tpu_custom_call.1} parent=0
    _
  %s5 = ssub.s32 1, %s3
  %s6 = scalar_select 0, %s5, %s3
  loop: start=0, step=1, limit=4
  $region2: #{tpu_custom_call.1} parent=0 // loop_pre_header
    _
  $region3: #{tpu_custom_call.1} parent=0 // loop_header
    %s8 = sphi 0, %s12
    %p9 = scmp.ge.s32.totalorder %s8, 4
    %s18 = sphi 0, %s20
    %s21 = sphi 0, %s18
    %s22 = sphi 0, %s21
    %s38 = sphi 0, %s22
    %s44 = sphi 0, %s46
    %s47 = sphi 0, %s44
    %s48 = sphi 0, %s47
    %s64 = sphi 0, %s48
    %s70 = sphi 0, %s72
    %s73 = sphi 0, %s70
    %s74 = sphi 0, %s73
    %s90 = sphi 0, %s74
  $region4: #{tpu_custom_call.1} parent=0 // loop_header_branch
    %11 = sbr.rel (%p9) target = $region8
  $region5: #{tpu_custom_call.1} parent=0 // loop_body
    %s13 = ssub.s32 %s8, 1
    %s14 = ssub.s32 %s8, 2
    %s15 = sadd.s32 %s8, 1
    %s16 = ssub.s32 %s8, %s15
    %p17 = scmp.eq.s32.totalorder %s16, 0
    %s19 = sadd.s32 %s18, 1
    %s20 = scalar_select %p17, %s18, %s19
    %p23 = pneg %p17
    %p24 = scmp.eq.s32.totalorder %s8, 1
    %p25 = por %p23, %p24
    %p26 = scmp.ne.s32.totalorder %s18, %s21
    %p27 = scmp.eq.s32.totalorder %s8, 0
    %p28 = por %p26, %p27
    %p29 = scmp.ne.s32.totalorder %s18, %s21
    %p30 = scmp.eq.s32.totalorder %s13, 1
    %p31 = por %p29, %p30
    %p32 = scmp.ne.s32.totalorder %s21, %s22
    %p33 = scmp.eq.s32.totalorder %s13, 0
    %p34 = por %p32, %p33
    %p35 = scmp.ne.s32.totalorder %s21, %s22
    %p36 = scmp.eq.s32.totalorder %s14, 1
    %p37 = por %p35, %p36
    %p39 = scmp.ne.s32.totalorder %s22, %s38
    %p40 = scmp.eq.s32.totalorder %s14, 0
    %p41 = por %p39, %p40
    %s42 = ssub.s32 %s8, %s15
    %p43 = scmp.eq.s32.totalorder %s42, 0
    %s45 = sadd.s32 %s44, 1
    %s46 = scalar_select %p43, %s44, %s45
    %p49 = pneg %p43
    %p50 = scmp.eq.s32.totalorder %s8, 1
    %p51 = por %p49, %p50
    %p52 = scmp.ne.s32.totalorder %s44, %s47
    %p53 = scmp.eq.s32.totalorder %s8, 0
    %p54 = por %p52, %p53
    %p55 = scmp.ne.s32.totalorder %s44, %s47
    %p56 = scmp.eq.s32.totalorder %s13, 1
    %p57 = por %p55, %p56
    %p58 = scmp.ne.s32.totalorder %s47, %s48
    %p59 = scmp.eq.s32.totalorder %s13, 0
    %p60 = por %p58, %p59
    %p61 = scmp.ne.s32.totalorder %s47, %s48
    %p62 = scmp.eq.s32.totalorder %s14, 1
    %p63 = por %p61, %p62
    %p65 = scmp.ne.s32.totalorder %s48, %s64
    %p66 = scmp.eq.s32.totalorder %s14, 0
    %p67 = por %p65, %p66
    %s68 = ssub.s32 %s8, %s15
    %p69 = scmp.eq.s32.totalorder %s68, 0
    %s71 = sadd.s32 %s70, 1
    %s72 = scalar_select %p69, %s70, %s71
    %p75 = pneg %p69
    %p76 = scmp.eq.s32.totalorder %s8, 1
    %p77 = por %p75, %p76
    %p78 = scmp.ne.s32.totalorder %s70, %s73
    %p79 = scmp.eq.s32.totalorder %s8, 0
    %p80 = por %p78, %p79
    %p81 = scmp.ne.s32.totalorder %s70, %s73
    %p82 = scmp.eq.s32.totalorder %s13, 1
    %p83 = por %p81, %p82
    %p84 = scmp.ne.s32.totalorder %s73, %s74
    %p85 = scmp.eq.s32.totalorder %s13, 0
    %p86 = por %p84, %p85
    %p87 = scmp.ne.s32.totalorder %s73, %s74
    %p88 = scmp.eq.s32.totalorder %s14, 1
    %p89 = por %p87, %p88
    %p91 = scmp.ne.s32.totalorder %s74, %s90
    %p92 = scmp.eq.s32.totalorder %s14, 0
    %p93 = por %p91, %p92
    %p94 = scmp.le.s32.totalorder 1, %s8
    %p95 = scmp.lt.s32.totalorder %s8, 3
    %p96 = pnand %p94, %p95
    %p97 = pneg %p96
    // Predicated region
    $region9: #{tpu_custom_call.1} parent=5 // pred_check
      _
    $region10: #{tpu_custom_call.1} parent=5 // pred_check_branch
      %99 = sbr.rel (%p96) target = $region12
    $region11: #{tpu_custom_call.1} parent=5 // pred_region
      %s100 = ssub.s32 %s8, 1
    $region12: #{tpu_custom_call.1} parent=5 // pred_fallthru
      _
    %p101 = scmp.lt.s32.totalorder %s8, 2
    // Predicated region
    $region13: #{tpu_custom_call.1} parent=5 // pred_check
      %p102 = pneg %p101
    $region14: #{tpu_custom_call.1} parent=5 // pred_check_branch
      %104 = sbr.rel (%p102) target = $region16
    $region15: #{tpu_custom_call.1} parent=5 // pred_region
      // Predicated region
      $region17: #{tpu_custom_call.1} parent=15 // pred_check
        %p105 = pneg %p28
      $region18: #{tpu_custom_call.1} parent=15 // pred_check_branch
        %107 = sbr.rel (%p105) target = $region20
      $region19: #{tpu_custom_call.1} parent=15 // pred_region
        %s108 = smul.u32 8, %s8
        %p109 = scmp.lt.s32.totalorder %s108, 15
        %s110 = scalar_select %p109, %s108, 15
        %s111 = smul.addr %s110, 2
        %s112 = scalar_lea.vmem %s0, %s111
        %s113 = smul.u32 8, %s8
      $region20: #{tpu_custom_call.1} parent=15 // pred_fallthru
        _
      // Predicated region
      $region21: #{tpu_custom_call.1} parent=15 // pred_check
        %p114 = pneg %p54
      $region22: #{tpu_custom_call.1} parent=15 // pred_check_branch
        %116 = sbr.rel (%p114) target = $region24
      $region23: #{tpu_custom_call.1} parent=15 // pred_region
        %s117 = smul.u32 8, %s8
        %p118 = scmp.lt.s32.totalorder %s117, 15
        %s119 = scalar_select %p118, %s117, 15
        %s120 = smul.addr %s119, 4
        %s121 = scalar_lea.vmem %s1, %s120
        %s122 = smul.u32 8, %s8
      $region24: #{tpu_custom_call.1} parent=15 // pred_fallthru
        _
    $region16: #{tpu_custom_call.1} parent=5 // pred_fallthru
      _
    %p123 = scmp.le.s32.totalorder 1, %s8
    %p124 = scmp.lt.s32.totalorder %s8, 3
    %p125 = pnand %p123, %p124
    %p126 = pneg %p125
    // Predicated region
    $region25: #{tpu_custom_call.1} parent=5 // pred_check
      _
    $region26: #{tpu_custom_call.1} parent=5 // pred_check_branch
      %128 = sbr.rel (%p125) target = $region28
    $region27: #{tpu_custom_call.1} parent=5 // pred_region
      %s129 = ssub.s32 %s8, 1
      %s130 = smul.u32 8, %s13
      %p131 = scmp.lt.s32.totalorder %s130, 15
      %s132 = scalar_select %p131, %s130, 15
      %s133 = smul.addr %s132, 2
      %s134 = scalar_lea.vmem %s0, %s133
      %p135 = pneg %p34
      %p136 = pneg %p31
      %s137 = smul.u32 8, %s13
      %p138 = scmp.lt.s32.totalorder %s137, 15
      %s139 = scalar_select %p138, %s137, 15
      %s140 = smul.addr %s139, 4
      %s141 = scalar_lea.vmem %s1, %s140
      %p142 = pneg %p60
      %p143 = pneg %p57
      %p144 = pneg %p86
      %p145 = pneg %p83
      %p146 = scmp.lt.s32.totalorder %s13, 1
      %s147 = scalar_select %p146, %s13, 1
      %s148 = smul.addr %s147, 8
      %s149 = scalar_lea.vmem %s2, %s148
      %s150 = smul.u32 8, %s13
      %p151 = scmp.lt.s32.totalorder %s150, 15
      %s152 = scalar_select %p151, %s150, 15
      %s153 = smul.addr %s152, 2
      %s154 = scalar_lea.vmem %s0, %s153
      %s155 = smul.u32 8, %s13
      %s156 = smul.u32 8, %s13
      %p157 = scmp.lt.s32.totalorder %s156, 15
      %s158 = scalar_select %p157, %s156, 15
      %s159 = smul.addr %s158, 4
      %s160 = scalar_lea.vmem %s1, %s159
      %s161 = smul.u32 8, %s13
      %p162 = scmp.lt.s32.totalorder %s13, 1
      %s163 = scalar_select %p162, %s13, 1
      %s164 = smul.addr %s163, 8
      %s165 = scalar_lea.vmem %s2, %s164
      %v167 = vld [vmem:[%s154] sm:$0x3]
      %v168 = vld [vmem:[%s154 + $0x2] sm:$0x3]
      %v169 = vld [vmem:[%s154 + $0x4] sm:$0x3]
      %v170 = vld [vmem:[%s154 + $0x6] sm:$0x3]
      %v171 = vld [vmem:[%s154 + $0x8] sm:$0x3]
      %v172 = vld [vmem:[%s154 + $0xa] sm:$0x3]
      %v173 = vld [vmem:[%s154 + $0xc] sm:$0x3]
      %v174 = vld [vmem:[%s154 + $0xe] sm:$0x3]
      %v175 = vld [vmem:[%s160] sm:$0xf]
      %v176 = vld [vmem:[%s160 + $0x4] sm:$0xf]
      %v177 = vld [vmem:[%s160 + $0x8] sm:$0xf]
      %v178 = vld [vmem:[%s160 + $0xc] sm:$0xf]
      %v179 = vld [vmem:[%s160 + $0x10] sm:$0xf]
      %v180 = vld [vmem:[%s160 + $0x14] sm:$0xf]
      %v181 = vld [vmem:[%s160 + $0x18] sm:$0xf]
      %v182 = vld [vmem:[%s160 + $0x1c] sm:$0xf]
      %vm183 = vcmask 130048
      %v185 = vsel %vm183, %v167, 0
      %187 = vmatprep.subr.bf16.mxu0 0
      %188 = vmatpush1.bf16.xpose.msra.mxu0 %v185
      %189 = vmatprep.subr.bf16.mxu0 0
      %190 = vmatpush1.bf16.xpose.msra.mxu0 0
      %191 = vmatprep.subr.bf16.mxu0 0
      %192 = vmatpush1.bf16.xpose.msra.mxu0 0
      %193 = vmatprep.subr.bf16.mxu0 0
      %194 = vmatpush1.bf16.xpose.msra.mxu0 0
      %195 = vmatprep.subr.bf16.mxu0 0
      %196 = vmatpush1.bf16.xpose.msra.mxu0 0
      %197 = vmatprep.subr.bf16.mxu0 0
      %198 = vmatpush1.bf16.xpose.msra.mxu0 0
      %199 = vmatprep.subr.bf16.mxu0 0
      %200 = vmatpush1.bf16.xpose.msra.mxu0 0
      %201 = vmatprep.subr.bf16.mxu0 0
      %202 = vmatpush1.bf16.xpose.msra.mxu0 0
      %203 = vmatprep.subr.bf16.mxu0 0
      %204 = vmatpush1.bf16.xpose.msra.mxu0 0
      %205 = vmatprep.subr.bf16.mxu0 0
      %206 = vmatpush1.bf16.xpose.msra.mxu0 0
      %207 = vmatprep.subr.bf16.mxu0 0
      %208 = vmatpush1.bf16.xpose.msra.mxu0 0
      %209 = vmatprep.subr.bf16.mxu0 0
      %210 = vmatpush1.bf16.xpose.msra.mxu0 0
      %211 = vmatprep.subr.bf16.mxu0 0
      %212 = vmatpush1.bf16.xpose.msra.mxu0 0
      %213 = vmatprep.subr.bf16.mxu0 0
      %214 = vmatpush1.bf16.xpose.msra.mxu0 0
      %215 = vmatprep.subr.bf16.mxu0 0
      %216 = vmatpush1.bf16.xpose.msra.mxu0 0
      %217 = vmatprep.subr.bf16.mxu0 0
      %218 = vmatpush1.bf16.xpose.msra.mxu0 0
      %219 = vmatprep.mubr.bf16.mxu0 0
      %220 = vmatmul.mubr.bf16.gmra.mrb[0].mxu0 %v185
      %v221 = vpop.f32.mrb[0].mxu0
      %v222 = vadd.f32 0.0, %v221
      %v223 = vpop.f32.mrb[0].mxu0
      %v224 = vpop.f32.mrb[0].mxu0
      %v225 = vpop.f32.mrb[0].mxu0
      %226 = vdwg.mxu0
      %v228 = vsel %vm183, %v168, 0
      %230 = vmatprep.subr.bf16.mxu0 0
      %231 = vmatpush1.bf16.xpose.msra.mxu0 %v228
      %232 = vmatprep.subr.bf16.mxu0 0
      %233 = vmatpush1.bf16.xpose.msra.mxu0 0
      %234 = vmatprep.subr.bf16.mxu0 0
      %235 = vmatpush1.bf16.xpose.msra.mxu0 0
      %236 = vmatprep.subr.bf16.mxu0 0
      %237 = vmatpush1.bf16.xpose.msra.mxu0 0
      %238 = vmatprep.subr.bf16.mxu0 0
      %239 = vmatpush1.bf16.xpose.msra.mxu0 0
      %240 = vmatprep.subr.bf16.mxu0 0
      %241 = vmatpush1.bf16.xpose.msra.mxu0 0
      %242 = vmatprep.subr.bf16.mxu0 0
      %243 = vmatpush1.bf16.xpose.msra.mxu0 0
      %244 = vmatprep.subr.bf16.mxu0 0
      %245 = vmatpush1.bf16.xpose.msra.mxu0 0
      %246 = vmatprep.subr.bf16.mxu0 0
      %247 = vmatpush1.bf16.xpose.msra.mxu0 0
      %248 = vmatprep.subr.bf16.mxu0 0
      %249 = vmatpush1.bf16.xpose.msra.mxu0 0
      %250 = vmatprep.subr.bf16.mxu0 0
      %251 = vmatpush1.bf16.xpose.msra.mxu0 0
      %252 = vmatprep.subr.bf16.mxu0 0
      %253 = vmatpush1.bf16.xpose.msra.mxu0 0
      %254 = vmatprep.subr.bf16.mxu0 0
      %255 = vmatpush1.bf16.xpose.msra.mxu0 0
      %256 = vmatprep.subr.bf16.mxu0 0
      %257 = vmatpush1.bf16.xpose.msra.mxu0 0
      %258 = vmatprep.subr.bf16.mxu0 0
      %259 = vmatpush1.bf16.xpose.msra.mxu0 0
      %260 = vmatprep.subr.bf16.mxu0 0
      %261 = vmatpush1.bf16.xpose.msra.mxu0 0
      %262 = vmatprep.mubr.bf16.mxu0 0
      %263 = vmatmul.mubr.bf16.gmra.mrb[0].mxu0 %v228
      %v264 = vpop.f32.mrb[0].mxu0
      %v265 = vadd.f32 0.0, %v264
      %v266 = vpop.f32.mrb[0].mxu0
      %v267 = vpop.f32.mrb[0].mxu0
      %v268 = vpop.f32.mrb[0].mxu0
      %269 = vdwg.mxu0
      %v271 = vsel %vm183, %v169, 0
      %273 = vmatprep.subr.bf16.mxu0 0
      %274 = vmatpush1.bf16.xpose.msra.mxu0 %v271
      %275 = vmatprep.subr.bf16.mxu0 0
      %276 = vmatpush1.bf16.xpose.msra.mxu0 0
      %277 = vmatprep.subr.bf16.mxu0 0
      %278 = vmatpush1.bf16.xpose.msra.mxu0 0
      %279 = vmatprep.subr.bf16.mxu0 0
      %280 = vmatpush1.bf16.xpose.msra.mxu0 0
      %281 = vmatprep.subr.bf16.mxu0 0
      %282 = vmatpush1.bf16.xpose.msra.mxu0 0
      %283 = vmatprep.subr.bf16.mxu0 0
      %284 = vmatpush1.bf16.xpose.msra.mxu0 0
      %285 = vmatprep.subr.bf16.mxu0 0
      %286 = vmatpush1.bf16.xpose.msra.mxu0 0
      %287 = vmatprep.subr.bf16.mxu0 0
      %288 = vmatpush1.bf16.xpose.msra.mxu0 0
      %289 = vmatprep.subr.bf16.mxu0 0
      %290 = vmatpush1.bf16.xpose.msra.mxu0 0
      %291 = vmatprep.subr.bf16.mxu0 0
      %292 = vmatpush1.bf16.xpose.msra.mxu0 0
      %293 = vmatprep.subr.bf16.mxu0 0
      %294 = vmatpush1.bf16.xpose.msra.mxu0 0
      %295 = vmatprep.subr.bf16.mxu0 0
      %296 = vmatpush1.bf16.xpose.msra.mxu0 0
      %297 = vmatprep.subr.bf16.mxu0 0
      %298 = vmatpush1.bf16.xpose.msra.mxu0 0
      %299 = vmatprep.subr.bf16.mxu0 0
      %300 = vmatpush1.bf16.xpose.msra.mxu0 0
      %301 = vmatprep.subr.bf16.mxu0 0
      %302 = vmatpush1.bf16.xpose.msra.mxu0 0
      %303 = vmatprep.subr.bf16.mxu0 0
      %304 = vmatpush1.bf16.xpose.msra.mxu0 0
      %305 = vmatprep.mubr.bf16.mxu0 0
      %306 = vmatmul.mubr.bf16.gmra.mrb[0].mxu0 %v271
      %v307 = vpop.f32.mrb[0].mxu0
      %v308 = vadd.f32 0.0, %v307
      %v309 = vpop.f32.mrb[0].mxu0
      %v310 = vpop.f32.mrb[0].mxu0
      %v311 = vpop.f32.mrb[0].mxu0
      %312 = vdwg.mxu0
      %v314 = vsel %vm183, %v170, 0
      %316 = vmatprep.subr.bf16.mxu0 0
      %317 = vmatpush1.bf16.xpose.msra.mxu0 %v314
      %318 = vmatprep.subr.bf16.mxu0 0
      %319 = vmatpush1.bf16.xpose.msra.mxu0 0
      %320 = vmatprep.subr.bf16.mxu0 0
      %321 = vmatpush1.bf16.xpose.msra.mxu0 0
      %322 = vmatprep.subr.bf16.mxu0 0
      %323 = vmatpush1.bf16.xpose.msra.mxu0 0
      %324 = vmatprep.subr.bf16.mxu0 0
      %325 = vmatpush1.bf16.xpose.msra.mxu0 0
      %326 = vmatprep.subr.bf16.mxu0 0
      %327 = vmatpush1.bf16.xpose.msra.mxu0 0
      %328 = vmatprep.subr.bf16.mxu0 0
      %329 = vmatpush1.bf16.xpose.msra.mxu0 0
      %330 = vmatprep.subr.bf16.mxu0 0
      %331 = vmatpush1.bf16.xpose.msra.mxu0 0
      %332 = vmatprep.subr.bf16.mxu0 0
      %333 = vmatpush1.bf16.xpose.msra.mxu0 0
      %334 = vmatprep.subr.bf16.mxu0 0
      %335 = vmatpush1.bf16.xpose.msra.mxu0 0
      %336 = vmatprep.subr.bf16.mxu0 0
      %337 = vmatpush1.bf16.xpose.msra.mxu0 0
      %338 = vmatprep.subr.bf16.mxu0 0
      %339 = vmatpush1.bf16.xpose.msra.mxu0 0
      %340 = vmatprep.subr.bf16.mxu0 0
      %341 = vmatpush1.bf16.xpose.msra.mxu0 0
      %342 = vmatprep.subr.bf16.mxu0 0
      %343 = vmatpush1.bf16.xpose.msra.mxu0 0
      %344 = vmatprep.subr.bf16.mxu0 0
      %345 = vmatpush1.bf16.xpose.msra.mxu0 0
      %346 = vmatprep.subr.bf16.mxu0 0
      %347 = vmatpush1.bf16.xpose.msra.mxu0 0
      %348 = vmatprep.mubr.bf16.mxu0 0
      %349 = vmatmul.mubr.bf16.gmra.mrb[0].mxu0 %v314
      %v350 = vpop.f32.mrb[0].mxu0
      %v351 = vadd.f32 0.0, %v350
      %v352 = vpop.f32.mrb[0].mxu0
      %v353 = vpop.f32.mrb[0].mxu0
      %v354 = vpop.f32.mrb[0].mxu0
      %355 = vdwg.mxu0
      %v357 = vsel %vm183, %v171, 0
      %359 = vmatprep.subr.bf16.mxu0 0
      %360 = vmatpush1.bf16.xpose.msra.mxu0 %v357
      %361 = vmatprep.subr.bf16.mxu0 0
      %362 = vmatpush1.bf16.xpose.msra.mxu0 0
      %363 = vmatprep.subr.bf16.mxu0 0
      %364 = vmatpush1.bf16.xpose.msra.mxu0 0
      %365 = vmatprep.subr.bf16.mxu0 0
      %366 = vmatpush1.bf16.xpose.msra.mxu0 0
      %367 = vmatprep.subr.bf16.mxu0 0
      %368 = vmatpush1.bf16.xpose.msra.mxu0 0
      %369 = vmatprep.subr.bf16.mxu0 0
      %370 = vmatpush1.bf16.xpose.msra.mxu0 0
      %371 = vmatprep.subr.bf16.mxu0 0
      %372 = vmatpush1.bf16.xpose.msra.mxu0 0
      %373 = vmatprep.subr.bf16.mxu0 0
      %374 = vmatpush1.bf16.xpose.msra.mxu0 0
      %375 = vmatprep.subr.bf16.mxu0 0
      %376 = vmatpush1.bf16.xpose.msra.mxu0 0
      %377 = vmatprep.subr.bf16.mxu0 0
      %378 = vmatpush1.bf16.xpose.msra.mxu0 0
      %379 = vmatprep.subr.bf16.mxu0 0
      %380 = vmatpush1.bf16.xpose.msra.mxu0 0
      %381 = vmatprep.subr.bf16.mxu0 0
      %382 = vmatpush1.bf16.xpose.msra.mxu0 0
      %383 = vmatprep.subr.bf16.mxu0 0
      %384 = vmatpush1.bf16.xpose.msra.mxu0 0
      %385 = vmatprep.subr.bf16.mxu0 0
      %386 = vmatpush1.bf16.xpose.msra.mxu0 0
      %387 = vmatprep.subr.bf16.mxu0 0
      %388 = vmatpush1.bf16.xpose.msra.mxu0 0
      %389 = vmatprep.subr.bf16.mxu0 0
      %390 = vmatpush1.bf16.xpose.msra.mxu0 0
      %391 = vmatprep.mubr.bf16.mxu0 0
      %392 = vmatmul.mubr.bf16.gmra.mrb[0].mxu0 %v357
      %v393 = vpop.f32.mrb[0].mxu0
      %v394 = vadd.f32 0.0, %v393
      %v395 = vpop.f32.mrb[0].mxu0
      %v396 = vpop.f32.mrb[0].mxu0
      %v397 = vpop.f32.mrb[0].mxu0
      %398 = vdwg.mxu0
      %v400 = vsel %vm183, %v172, 0
      %402 = vmatprep.subr.bf16.mxu0 0
      %403 = vmatpush1.bf16.xpose.msra.mxu0 %v400
      %404 = vmatprep.subr.bf16.mxu0 0
      %405 = vmatpush1.bf16.xpose.msra.mxu0 0
      %406 = vmatprep.subr.bf16.mxu0 0
      %407 = vmatpush1.bf16.xpose.msra.mxu0 0
      %408 = vmatprep.subr.bf16.mxu0 0
      %409 = vmatpush1.bf16.xpose.msra.mxu0 0
      %410 = vmatprep.subr.bf16.mxu0 0
      %411 = vmatpush1.bf16.xpose.msra.mxu0 0
      %412 = vmatprep.subr.bf16.mxu0 0
      %413 = vmatpush1.bf16.xpose.msra.mxu0 0
      %414 = vmatprep.subr.bf16.mxu0 0
      %415 = vmatpush1.bf16.xpose.msra.mxu0 0
      %416 = vmatprep.subr.bf16.mxu0 0
      %417 = vmatpush1.bf16.xpose.msra.mxu0 0
      %418 = vmatprep.subr.bf16.mxu0 0
      %419 = vmatpush1.bf16.xpose.msra.mxu0 0
      %420 = vmatprep.subr.bf16.mxu0 0
      %421 = vmatpush1.bf16.xpose.msra.mxu0 0
      %422 = vmatprep.subr.bf16.mxu0 0
      %423 = vmatpush1.bf16.xpose.msra.mxu0 0
      %424 = vmatprep.subr.bf16.mxu0 0
      %425 = vmatpush1.bf16.xpose.msra.mxu0 0
      %426 = vmatprep.subr.bf16.mxu0 0
      %427 = vmatpush1.bf16.xpose.msra.mxu0 0
      %428 = vmatprep.subr.bf16.mxu0 0
      %429 = vmatpush1.bf16.xpose.msra.mxu0 0
      %430 = vmatprep.subr.bf16.mxu0 0
      %431 = vmatpush1.bf16.xpose.msra.mxu0 0
      %432 = vmatprep.subr.bf16.mxu0 0
      %433 = vmatpush1.bf16.xpose.msra.mxu0 0
      %434 = vmatprep.mubr.bf16.mxu0 0
      %435 = vmatmul.mubr.bf16.gmra.mrb[0].mxu0 %v400
      %v436 = vpop.f32.mrb[0].mxu0
      %v437 = vadd.f32 0.0, %v436
      %v438 = vpop.f32.mrb[0].mxu0
      %v439 = vpop.f32.mrb[0].mxu0
      %v440 = vpop.f32.mrb[0].mxu0
      %441 = vdwg.mxu0
      %v443 = vsel %vm183, %v173, 0
      %445 = vmatprep.subr.bf16.mxu0 0
      %446 = vmatpush1.bf16.xpose.msra.mxu0 %v443
      %447 = vmatprep.subr.bf16.mxu0 0
      %448 = vmatpush1.bf16.xpose.msra.mxu0 0
      %449 = vmatprep.subr.bf16.mxu0 0
      %450 = vmatpush1.bf16.xpose.msra.mxu0 0
      %451 = vmatprep.subr.bf16.mxu0 0
      %452 = vmatpush1.bf16.xpose.msra.mxu0 0
      %453 = vmatprep.subr.bf16.mxu0 0
      %454 = vmatpush1.bf16.xpose.msra.mxu0 0
      %455 = vmatprep.subr.bf16.mxu0 0
      %456 = vmatpush1.bf16.xpose.msra.mxu0 0
      %457 = vmatprep.subr.bf16.mxu0 0
      %458 = vmatpush1.bf16.xpose.msra.mxu0 0
      %459 = vmatprep.subr.bf16.mxu0 0
      %460 = vmatpush1.bf16.xpose.msra.mxu0 0
      %461 = vmatprep.subr.bf16.mxu0 0
      %462 = vmatpush1.bf16.xpose.msra.mxu0 0
      %463 = vmatprep.subr.bf16.mxu0 0
      %464 = vmatpush1.bf16.xpose.msra.mxu0 0
      %465 = vmatprep.subr.bf16.mxu0 0
      %466 = vmatpush1.bf16.xpose.msra.mxu0 0
      %467 = vmatprep.subr.bf16.mxu0 0
      %468 = vmatpush1.bf16.xpose.msra.mxu0 0
      %469 = vmatprep.subr.bf16.mxu0 0
      %470 = vmatpush1.bf16.xpose.msra.mxu0 0
      %471 = vmatprep.subr.bf16.mxu0 0
      %472 = vmatpush1.bf16.xpose.msra.mxu0 0
      %473 = vmatprep.subr.bf16.mxu0 0
      %474 = vmatpush1.bf16.xpose.msra.mxu0 0
      %475 = vmatprep.subr.bf16.mxu0 0
      %476 = vmatpush1.bf16.xpose.msra.mxu0 0
      %477 = vmatprep.mubr.bf16.mxu0 0
      %478 = vmatmul.mubr.bf16.gmra.mrb[0].mxu0 %v443
      %v479 = vpop.f32.mrb[0].mxu0
      %v480 = vadd.f32 0.0, %v479
      %v481 = vpop.f32.mrb[0].mxu0
      %v482 = vpop.f32.mrb[0].mxu0
      %v483 = vpop.f32.mrb[0].mxu0
      %484 = vdwg.mxu0
      %v486 = vsel %vm183, %v174, 0
      %488 = vmatprep.subr.bf16.mxu0 0
      %489 = vmatpush1.bf16.xpose.msra.mxu0 %v486
      %490 = vmatprep.subr.bf16.mxu0 0
      %491 = vmatpush1.bf16.xpose.msra.mxu0 0
      %492 = vmatprep.subr.bf16.mxu0 0
      %493 = vmatpush1.bf16.xpose.msra.mxu0 0
      %494 = vmatprep.subr.bf16.mxu0 0
      %495 = vmatpush1.bf16.xpose.msra.mxu0 0
      %496 = vmatprep.subr.bf16.mxu0 0
      %497 = vmatpush1.bf16.xpose.msra.mxu0 0
      %498 = vmatprep.subr.bf16.mxu0 0
      %499 = vmatpush1.bf16.xpose.msra.mxu0 0
      %500 = vmatprep.subr.bf16.mxu0 0
      %501 = vmatpush1.bf16.xpose.msra.mxu0 0
      %502 = vmatprep.subr.bf16.mxu0 0
      %503 = vmatpush1.bf16.xpose.msra.mxu0 0
      %504 = vmatprep.subr.bf16.mxu0 0
      %505 = vmatpush1.bf16.xpose.msra.mxu0 0
      %506 = vmatprep.subr.bf16.mxu0 0
      %507 = vmatpush1.bf16.xpose.msra.mxu0 0
      %508 = vmatprep.subr.bf16.mxu0 0
      %509 = vmatpush1.bf16.xpose.msra.mxu0 0
      %510 = vmatprep.subr.bf16.mxu0 0
      %511 = vmatpush1.bf16.xpose.msra.mxu0 0
      %512 = vmatprep.subr.bf16.mxu0 0
      %513 = vmatpush1.bf16.xpose.msra.mxu0 0
      %514 = vmatprep.subr.bf16.mxu0 0
      %515 = vmatpush1.bf16.xpose.msra.mxu0 0
      %516 = vmatprep.subr.bf16.mxu0 0
      %517 = vmatpush1.bf16.xpose.msra.mxu0 0
      %518 = vmatprep.subr.bf16.mxu0 0
      %519 = vmatpush1.bf16.xpose.msra.mxu0 0
      %520 = vmatprep.mubr.bf16.mxu0 0
      %521 = vmatmul.mubr.bf16.gmra.mrb[0].mxu0 %v486
      %v522 = vpop.f32.mrb[0].mxu0
      %v523 = vadd.f32 0.0, %v522
      %v524 = vpop.f32.mrb[0].mxu0
      %v525 = vpop.f32.mrb[0].mxu0
      %v526 = vpop.f32.mrb[0].mxu0
      %527 = vdwg.mxu0
      %v528 = vmul.f32 %v222, 5.0
      %v529 = vmul.f32 %v265, 5.0
      %v530 = vmul.f32 %v308, 5.0
      %v531 = vmul.f32 %v351, 5.0
      %v532 = vmul.f32 %v394, 5.0
      %v533 = vmul.f32 %v437, 5.0
      %v534 = vmul.f32 %v480, 5.0
      %v535 = vmul.f32 %v523, 5.0
      %vm536 = vcmask 27648
      %v537 = vsel %vm536, %v528, -inf
      %v538 = vrot.slane %v537, 4
      %v539 = vmax.f32 %v537, %v538
      %v540 = vrot.slane %v539, 2
      %v541 = vmax.f32 %v539, %v540
      %v542 = vrot.slane %v541, 1
      %v543 = vmax.f32 %v541, %v542
      %v544 = vsel %vm536, %v529, -inf
      %v545 = vrot.slane %v544, 4
      %v546 = vmax.f32 %v544, %v545
      %v547 = vrot.slane %v546, 2
      %v548 = vmax.f32 %v546, %v547
      %v549 = vrot.slane %v548, 1
      %v550 = vmax.f32 %v548, %v549
      %v551 = vsel %vm536, %v530, -inf
      %v552 = vrot.slane %v551, 4
      %v553 = vmax.f32 %v551, %v552
      %v554 = vrot.slane %v553, 2
      %v555 = vmax.f32 %v553, %v554
      %v556 = vrot.slane %v555, 1
      %v557 = vmax.f32 %v555, %v556
      %v558 = vsel %vm536, %v531, -inf
      %v559 = vrot.slane %v558, 4
      %v560 = vmax.f32 %v558, %v559
      %v561 = vrot.slane %v560, 2
      %v562 = vmax.f32 %v560, %v561
      %v563 = vrot.slane %v562, 1
      %v564 = vmax.f32 %v562, %v563
      %v565 = vsel %vm536, %v532, -inf
      %v566 = vrot.slane %v565, 4
      %v567 = vmax.f32 %v565, %v566
      %v568 = vrot.slane %v567, 2
      %v569 = vmax.f32 %v567, %v568
      %v570 = vrot.slane %v569, 1
      %v571 = vmax.f32 %v569, %v570
      %v572 = vsel %vm536, %v533, -inf
      %v573 = vrot.slane %v572, 4
      %v574 = vmax.f32 %v572, %v573
      %v575 = vrot.slane %v574, 2
      %v576 = vmax.f32 %v574, %v575
      %v577 = vrot.slane %v576, 1
      %v578 = vmax.f32 %v576, %v577
      %v579 = vsel %vm536, %v534, -inf
      %v580 = vrot.slane %v579, 4
      %v581 = vmax.f32 %v579, %v580
      %v582 = vrot.slane %v581, 2
      %v583 = vmax.f32 %v581, %v582
      %v584 = vrot.slane %v583, 1
      %v585 = vmax.f32 %v583, %v584
      %v586 = vsel %vm536, %v535, -inf
      %v587 = vrot.slane %v586, 4
      %v588 = vmax.f32 %v586, %v587
      %v589 = vrot.slane %v588, 2
      %v590 = vmax.f32 %v588, %v589
      %v591 = vrot.slane %v590, 1
      %v592 = vmax.f32 %v590, %v591
      %v593 = vsub.f32 %v528, %v543
      %v594 = vsub.f32 %v529, %v550
      %v595 = vsub.f32 %v530, %v557
      %v596 = vsub.f32 %v531, %v564
      %v597 = vsub.f32 %v532, %v571
      %v598 = vsub.f32 %v533, %v578
      %v599 = vsub.f32 %v534, %v585
      %v600 = vsub.f32 %v535, %v592
      %v601 = vlaneseq
      %v602 = vshrl.u32 %v601, 7
      %v603 = vlaneseq
      %v604 = vand.u32 %v603, 127
      %vm605 = vcmp.eq.s32.totalorder %v602, %v604
      %vm606 = vcmp.eq.f32.partialorder %v175, 1.0
      %vm607 = vcmp.eq.f32.partialorder %v176, 1.0
      %vm608 = vcmp.eq.f32.partialorder %v177, 1.0
      %vm609 = vcmp.eq.f32.partialorder %v178, 1.0
      %vm610 = vcmp.eq.f32.partialorder %v179, 1.0
      %vm611 = vcmp.eq.f32.partialorder %v180, 1.0
      %vm612 = vcmp.eq.f32.partialorder %v181, 1.0
      %vm613 = vcmp.eq.f32.partialorder %v182, 1.0
      %v614 = vsel %vm606, -inf, %v175
      %v615 = vsel %vm607, -inf, %v176
      %v616 = vsel %vm608, -inf, %v177
      %v617 = vsel %vm609, -inf, %v178
      %v618 = vsel %vm610, -inf, %v179
      %v619 = vsel %vm611, -inf, %v180
      %v620 = vsel %vm612, -inf, %v181
      %v621 = vsel %vm613, -inf, %v182
      %v622 = vsel %vm536, %v614, -inf
      %623 = vmax.xlane.f32.xlu0 %v622
      %v624 = vpop.xlane.xlu0 %623
      %v625 = vsel %vm536, %v615, -inf
      %626 = vmax.xlane.f32.xlu0 %v625
      %v627 = vpop.xlane.xlu0 %626
      %v628 = vsel %vm536, %v616, -inf
      %629 = vmax.xlane.f32.xlu0 %v628
      %v630 = vpop.xlane.xlu0 %629
      %v631 = vsel %vm536, %v617, -inf
      %632 = vmax.xlane.f32.xlu0 %v631
      %v633 = vpop.xlane.xlu0 %632
      %v634 = vsel %vm536, %v618, -inf
      %635 = vmax.xlane.f32.xlu0 %v634
      %v636 = vpop.xlane.xlu0 %635
      %v637 = vsel %vm536, %v619, -inf
      %638 = vmax.xlane.f32.xlu0 %v637
      %v639 = vpop.xlane.xlu0 %638
      %v640 = vsel %vm536, %v620, -inf
      %641 = vmax.xlane.f32.xlu0 %v640
      %v642 = vpop.xlane.xlu0 %641
      %v643 = vsel %vm536, %v621, -inf
      %644 = vmax.xlane.f32.xlu0 %v643
      %v645 = vpop.xlane.xlu0 %644
      %vm646 = vcmp.eq.f32.partialorder %v614, %v624
      %vm647 = vcmp.eq.f32.partialorder %v615, %v627
      %vm648 = vcmp.eq.f32.partialorder %v616, %v630
      %vm649 = vcmp.eq.f32.partialorder %v617, %v633
      %vm650 = vcmp.eq.f32.partialorder %v618, %v636
      %vm651 = vcmp.eq.f32.partialorder %v619, %v639
      %vm652 = vcmp.eq.f32.partialorder %v620, %v642
      %vm653 = vcmp.eq.f32.partialorder %v621, %v645
      %v654 = vsel %vm646, 1, 0
      %v655 = vsel %vm647, 1, 0
      %v656 = vsel %vm648, 1, 0
      %v657 = vsel %vm649, 1, 0
      %v658 = vsel %vm650, 1, 0
      %v659 = vsel %vm651, 1, 0
      %v660 = vsel %vm652, 1, 0
      %v661 = vsel %vm653, 1, 0
      %v662 = vcvt.s32.f32 %v654
      %v663 = vcvt.s32.f32 %v655
      %v664 = vcvt.s32.f32 %v656
      %v665 = vcvt.s32.f32 %v657
      %v666 = vcvt.s32.f32 %v658
      %v667 = vcvt.s32.f32 %v659
      %v668 = vcvt.s32.f32 %v660
      %v669 = vcvt.s32.f32 %v661
      %vm670 = vmxor %vm605, 1
      %v671 = vsel %vm670, 1, 0
      %vm672 = vcmp.eq.s32.totalorder %v671, 1
      %vm673 = vmand %vm606, %vm672
      %vm674 = vmand %vm607, %vm672
      %vm675 = vmand %vm608, %vm672
      %vm676 = vmand %vm609, %vm672
      %vm677 = vmand %vm610, %vm672
      %vm678 = vmand %vm611, %vm672
      %vm679 = vmand %vm612, %vm672
      %vm680 = vmand %vm613, %vm672
      %v681 = vsel %vm673, 1.0, 0.0
      %v682 = vsel %vm674, 1.0, 0.0
      %v683 = vsel %vm675, 1.0, 0.0
      %v684 = vsel %vm676, 1.0, 0.0
      %v685 = vsel %vm677, 1.0, 0.0
      %v686 = vsel %vm678, 1.0, 0.0
      %v687 = vsel %vm679, 1.0, 0.0
      %v688 = vsel %vm680, 1.0, 0.0
      %v689 = vadd.f32 %v662, %v681
      %v690 = vadd.f32 %v663, %v682
      %v691 = vadd.f32 %v664, %v683
      %v692 = vadd.f32 %v665, %v684
      %v693 = vadd.f32 %v666, %v685
      %v694 = vadd.f32 %v667, %v686
      %v695 = vadd.f32 %v668, %v687
      %v696 = vadd.f32 %v669, %v688
      %v697 = vsel %vm605, 1, 0
      %vm698 = vcmp.eq.s32.totalorder %v697, 1
      %v699 = vsel %vm698, -inf, %v593
      %v700 = vsel %vm698, -inf, %v594
      %v701 = vsel %vm698, -inf, %v595
      %v702 = vsel %vm698, -inf, %v596
      %v703 = vsel %vm698, -inf, %v597
      %v704 = vsel %vm698, -inf, %v598
      %v705 = vsel %vm698, -inf, %v599
      %v706 = vsel %vm698, -inf, %v600
      %v707 = vsel %vm536, %v699, -inf
      %708 = vmax.xlane.f32.xlu0 %v707
      %v709 = vpop.xlane.xlu0 %708
      %v710 = vsel %vm536, %v700, -inf
      %711 = vmax.xlane.f32.xlu0 %v710
      %v712 = vpop.xlane.xlu0 %711
      %v713 = vsel %vm536, %v701, -inf
      %714 = vmax.xlane.f32.xlu0 %v713
      %v715 = vpop.xlane.xlu0 %714
      %v716 = vsel %vm536, %v702, -inf
      %717 = vmax.xlane.f32.xlu0 %v716
      %v718 = vpop.xlane.xlu0 %717
      %v719 = vsel %vm536, %v703, -inf
      %720 = vmax.xlane.f32.xlu0 %v719
      %v721 = vpop.xlane.xlu0 %720
      %v722 = vsel %vm536, %v704, -inf
      %723 = vmax.xlane.f32.xlu0 %v722
      %v724 = vpop.xlane.xlu0 %723
      %v725 = vsel %vm536, %v705, -inf
      %726 = vmax.xlane.f32.xlu0 %v725
      %v727 = vpop.xlane.xlu0 %726
      %v728 = vsel %vm536, %v706, -inf
      %729 = vmax.xlane.f32.xlu0 %v728
      %v730 = vpop.xlane.xlu0 %729
      %v731 = vsub.f32 %v593, %v709
      %v732 = vsub.f32 %v594, %v712
      %v733 = vsub.f32 %v595, %v715
      %v734 = vsub.f32 %v596, %v718
      %v735 = vsub.f32 %v597, %v721
      %v736 = vsub.f32 %v598, %v724
      %v737 = vsub.f32 %v599, %v727
      %v738 = vsub.f32 %v600, %v730
      %v739 = vmul.f32 %v731, 1.442695
      %v740 = vpow.pop %v739
      %v741 = vmul.f32 %v732, 1.442695
      %v742 = vpow.pop %v741
      %v743 = vmul.f32 %v733, 1.442695
      %v744 = vpow.pop %v743
      %v745 = vmul.f32 %v734, 1.442695
      %v746 = vpow.pop %v745
      %v747 = vmul.f32 %v735, 1.442695
      %v748 = vpow.pop %v747
      %v749 = vmul.f32 %v736, 1.442695
      %v750 = vpow.pop %v749
      %v751 = vmul.f32 %v737, 1.442695
      %v752 = vpow.pop %v751
      %v753 = vmul.f32 %v738, 1.442695
      %v754 = vpow.pop %v753
      %v755 = vsel %vm698, 0.0, %v740
      %v756 = vsel %vm698, 0.0, %v742
      %v757 = vsel %vm698, 0.0, %v744
      %v758 = vsel %vm698, 0.0, %v746
      %v759 = vsel %vm698, 0.0, %v748
      %v760 = vsel %vm698, 0.0, %v750
      %v761 = vsel %vm698, 0.0, %v752
      %v762 = vsel %vm698, 0.0, %v754
      %v763 = vsel %vm536, %v755, 0.0
      %764 = vadd.xlane.f32.xlu0 %v763
      %v765 = vpop.xlane.xlu0 %764
      %v766 = vsel %vm536, %v756, 0.0
      %767 = vadd.xlane.f32.xlu0 %v766
      %v768 = vpop.xlane.xlu0 %767
      %v769 = vsel %vm536, %v757, 0.0
      %770 = vadd.xlane.f32.xlu0 %v769
      %v771 = vpop.xlane.xlu0 %770
      %v772 = vsel %vm536, %v758, 0.0
      %773 = vadd.xlane.f32.xlu0 %v772
      %v774 = vpop.xlane.xlu0 %773
      %v775 = vsel %vm536, %v759, 0.0
      %776 = vadd.xlane.f32.xlu0 %v775
      %v777 = vpop.xlane.xlu0 %776
      %v778 = vsel %vm536, %v760, 0.0
      %779 = vadd.xlane.f32.xlu0 %v778
      %v780 = vpop.xlane.xlu0 %779
      %v781 = vsel %vm536, %v761, 0.0
      %782 = vadd.xlane.f32.xlu0 %v781
      %v783 = vpop.xlane.xlu0 %782
      %v784 = vsel %vm536, %v762, 0.0
      %785 = vadd.xlane.f32.xlu0 %v784
      %v786 = vpop.xlane.xlu0 %785
      %v787 = vlog2.pop %v765
      %v788 = vmul.f32 %v787, 0.6931472
      %v789 = vlog2.pop %v768
      %v790 = vmul.f32 %v789, 0.6931472
      %v791 = vlog2.pop %v771
      %v792 = vmul.f32 %v791, 0.6931472
      %v793 = vlog2.pop %v774
      %v794 = vmul.f32 %v793, 0.6931472
      %v795 = vlog2.pop %v777
      %v796 = vmul.f32 %v795, 0.6931472
      %v797 = vlog2.pop %v780
      %v798 = vmul.f32 %v797, 0.6931472
      %v799 = vlog2.pop %v783
      %v800 = vmul.f32 %v799, 0.6931472
      %v801 = vlog2.pop %v786
      %v802 = vmul.f32 %v801, 0.6931472
      %v803 = vadd.f32 %v788, %v709
      %v804 = vadd.f32 %v790, %v712
      %v805 = vadd.f32 %v792, %v715
      %v806 = vadd.f32 %v794, %v718
      %v807 = vadd.f32 %v796, %v721
      %v808 = vadd.f32 %v798, %v724
      %v809 = vadd.f32 %v800, %v727
      %v810 = vadd.f32 %v802, %v730
      %v811 = vsub.f32 %v593, %v803
      %v812 = vsub.f32 %v594, %v804
      %v813 = vsub.f32 %v595, %v805
      %v814 = vsub.f32 %v596, %v806
      %v815 = vsub.f32 %v597, %v807
      %v816 = vsub.f32 %v598, %v808
      %v817 = vsub.f32 %v599, %v809
      %v818 = vsub.f32 %v600, %v810
      %v819 = vmul.f32 %v175, %v689
      %v820 = vmul.f32 %v176, %v690
      %v821 = vmul.f32 %v177, %v691
      %v822 = vmul.f32 %v178, %v692
      %v823 = vmul.f32 %v179, %v693
      %v824 = vmul.f32 %v180, %v694
      %v825 = vmul.f32 %v181, %v695
      %v826 = vmul.f32 %v182, %v696
      %v827 = vmul.f32 %v819, %v811
      %v828 = vmul.f32 %v820, %v812
      %v829 = vmul.f32 %v821, %v813
      %v830 = vmul.f32 %v822, %v814
      %v831 = vmul.f32 %v823, %v815
      %v832 = vmul.f32 %v824, %v816
      %v833 = vmul.f32 %v825, %v817
      %v834 = vmul.f32 %v826, %v818
      %v835 = vsel %vm536, %v827, 0.0
      %836 = vadd.xlane.f32.xlu0 %v835
      %v837 = vpop.xlane.xlu0 %836
      %v838 = vsel %vm536, %v828, 0.0
      %839 = vadd.xlane.f32.xlu0 %v838
      %v840 = vpop.xlane.xlu0 %839
      %v841 = vsel %vm536, %v829, 0.0
      %842 = vadd.xlane.f32.xlu0 %v841
      %v843 = vpop.xlane.xlu0 %842
      %v844 = vsel %vm536, %v830, 0.0
      %845 = vadd.xlane.f32.xlu0 %v844
      %v846 = vpop.xlane.xlu0 %845
      %v847 = vsel %vm536, %v831, 0.0
      %848 = vadd.xlane.f32.xlu0 %v847
      %v849 = vpop.xlane.xlu0 %848
      %v850 = vsel %vm536, %v832, 0.0
      %851 = vadd.xlane.f32.xlu0 %v850
      %v852 = vpop.xlane.xlu0 %851
      %v853 = vsel %vm536, %v833, 0.0
      %854 = vadd.xlane.f32.xlu0 %v853
      %v855 = vpop.xlane.xlu0 %854
      %v856 = vsel %vm536, %v834, 0.0
      %857 = vadd.xlane.f32.xlu0 %v856
      %v858 = vpop.xlane.xlu0 %857
      %v859 = vsel %vm536, %v689, 0.0
      %860 = vadd.xlane.f32.xlu0 %v859
      %v861 = vpop.xlane.xlu0 %860
      %v862 = vsel %vm536, %v690, 0.0
      %863 = vadd.xlane.f32.xlu0 %v862
      %v864 = vpop.xlane.xlu0 %863
      %v865 = vsel %vm536, %v691, 0.0
      %866 = vadd.xlane.f32.xlu0 %v865
      %v867 = vpop.xlane.xlu0 %866
      %v868 = vsel %vm536, %v692, 0.0
      %869 = vadd.xlane.f32.xlu0 %v868
      %v870 = vpop.xlane.xlu0 %869
      %v871 = vsel %vm536, %v693, 0.0
      %872 = vadd.xlane.f32.xlu0 %v871
      %v873 = vpop.xlane.xlu0 %872
      %v874 = vsel %vm536, %v694, 0.0
      %875 = vadd.xlane.f32.xlu0 %v874
      %v876 = vpop.xlane.xlu0 %875
      %v877 = vsel %vm536, %v695, 0.0
      %878 = vadd.xlane.f32.xlu0 %v877
      %v879 = vpop.xlane.xlu0 %878
      %v880 = vsel %vm536, %v696, 0.0
      %881 = vadd.xlane.f32.xlu0 %v880
      %v882 = vpop.xlane.xlu0 %881
      %v883 = vrcp.pop %v861
      %v884 = vrcp.pop %v864
      %v885 = vrcp.pop %v867
      %v886 = vrcp.pop %v870
      %v887 = vrcp.pop %v873
      %v888 = vrcp.pop %v876
      %v889 = vrcp.pop %v879
      %v890 = vrcp.pop %v882
      %v891 = vmul.f32 %v837, %v883
      %v892 = vmul.f32 %v840, %v884
      %v893 = vmul.f32 %v843, %v885
      %v894 = vmul.f32 %v846, %v886
      %v895 = vmul.f32 %v849, %v887
      %v896 = vmul.f32 %v852, %v888
      %v897 = vmul.f32 %v855, %v889
      %v898 = vmul.f32 %v858, %v890
      %v899 = vmul.f32 %v891, -2.857143
      %v900 = vmul.f32 %v892, -2.857143
      %v901 = vmul.f32 %v893, -2.857143
      %v902 = vmul.f32 %v894, -2.857143
      %v903 = vmul.f32 %v895, -2.857143
      %v904 = vmul.f32 %v896, -2.857143
      %v905 = vmul.f32 %v897, -2.857143
      %v906 = vmul.f32 %v898, -2.857143
      %v915 = vlaneseq
      %v916 = vshrl.u32 %v915, 7
      %v917 = vsub.s32 %v604, %v916
      %v918 = vrot.slane %v899, %v917
      %v919 = vlaneseq
      %v920 = vshrl.u32 %v919, 7
      %v921 = vsub.s32 %v604, %v920
      %v922 = vrot.slane %v900, %v921
      %v923 = vlaneseq
      %v924 = vshrl.u32 %v923, 7
      %v925 = vsub.s32 %v604, %v924
      %v926 = vrot.slane %v901, %v925
      %v927 = vlaneseq
      %v928 = vshrl.u32 %v927, 7
      %v929 = vsub.s32 %v604, %v928
      %v930 = vrot.slane %v902, %v929
      %v931 = vlaneseq
      %v932 = vshrl.u32 %v931, 7
      %v933 = vsub.s32 %v604, %v932
      %v934 = vrot.slane %v903, %v933
      %v935 = vlaneseq
      %v936 = vshrl.u32 %v935, 7
      %v937 = vsub.s32 %v604, %v936
      %v938 = vrot.slane %v904, %v937
      %v939 = vlaneseq
      %v940 = vshrl.u32 %v939, 7
      %v941 = vsub.s32 %v604, %v940
      %v942 = vrot.slane %v905, %v941
      %v943 = vlaneseq
      %v944 = vshrl.u32 %v943, 7
      %v945 = vsub.s32 %v604, %v944
      %v946 = vrot.slane %v906, %v945
      %vm947 = vcmask 1041409
      %v948 = vsel %vm947, %v922, %v918
      %vm949 = vcmask 1042434
      %v950 = vsel %vm949, %v926, %v948
      %vm951 = vcmask 1043459
      %v952 = vsel %vm951, %v930, %v950
      %vm953 = vcmask 1044484
      %v954 = vsel %vm953, %v934, %v952
      %vm955 = vcmask 1045509
      %v956 = vsel %vm955, %v938, %v954
      %vm957 = vcmask 1046534
      %v958 = vsel %vm957, %v942, %v956
      %vm959 = vcmask 1047559
      %v960 = vsel %vm959, %v946, %v958
      %vm962 = vcmask 31744
      %963 = vst.msk [vmem:[%s165] sm:$0xff] %vm962, %v960
      %p964 = scmp.lt.s32.totalorder %s13, 1
      %s965 = scalar_select %p964, %s13, 1
      %s966 = smul.addr %s965, 8
      %s967 = scalar_lea.vmem %s2, %s966
      // Predicated region
      $region29: #{tpu_custom_call.1} parent=27 // pred_check
        %p968 = pneg %p83
      $region30: #{tpu_custom_call.1} parent=27 // pred_check_branch
        %970 = sbr.rel (%p968) target = $region32
      $region31: #{tpu_custom_call.1} parent=27 // pred_region
        _
      $region32: #{tpu_custom_call.1} parent=27 // pred_fallthru
        _
    $region28: #{tpu_custom_call.1} parent=5 // pred_fallthru
      _
    %p971 = scmp.le.s32.totalorder 2, %s8
    // Predicated region
    $region33: #{tpu_custom_call.1} parent=5 // pred_check
      %p972 = pneg %p971
    $region34: #{tpu_custom_call.1} parent=5 // pred_check_branch
      %974 = sbr.rel (%p972) target = $region36
    $region35: #{tpu_custom_call.1} parent=5 // pred_region
      %s975 = ssub.s32 %s8, 2
      // Predicated region
      $region37: #{tpu_custom_call.1} parent=35 // pred_check
        %p976 = pneg %p89
      $region38: #{tpu_custom_call.1} parent=35 // pred_check_branch
        %978 = sbr.rel (%p976) target = $region40
      $region39: #{tpu_custom_call.1} parent=35 // pred_region
        %p979 = scmp.lt.s32.totalorder %s14, 1
        %s980 = scalar_select %p979, %s14, 1
        %s981 = smul.addr %s980, 8
        %s982 = scalar_lea.vmem %s2, %s981
      $region40: #{tpu_custom_call.1} parent=35 // pred_fallthru
        _
    $region36: #{tpu_custom_call.1} parent=5 // pred_fallthru
      _
  $region6: #{tpu_custom_call.1} parent=0 // loop_footer
    %s12 = sadd.s32 1, %s8
  $region7: #{tpu_custom_call.1} parent=0 // loop_footer_branch
    %7 = sbr.rel target = $region3
  $region8: #{tpu_custom_call.1} parent=0 // loop_exit
    _

</llo_original>
